<compile_context>
chip_gen: v5e
topology: v5e:2x2
jax: 0.10.0
libtpu: 0.0.40
codegen_flags: <defaults>
</compile_context>

<pallas_src>
import jax
import jax.numpy as jnp
from jax.experimental import pallas as pl
from jax.experimental.pallas import tpu as pltpu

HIDDEN_SIZE = 10
INPUT_SIZE = 3
OUTPUT_SIZE = 1

_LANE = 128
_SUBLANE = 8


def _round_up(n, m):
    return ((n + m - 1) // m) * m


def _make_rnn_kernel(T, TB):
    """Kernel closure with static trip count T and batch tile TB."""

    def kernel(x_ref, wih_ref, whh_ref, b_ref, wfc_ref, bfc_ref, out_ref):
        # x_ref:   (T, TB, Ip)  time-major input tile (lane-padded I)
        # wih_ref: (Ip, Hp)     W_ih^T (zero-padded)
        # whh_ref: (Hp, Hp)     W_hh^T (zero-padded)
        # b_ref:   (1, Hp)      b_ih + b_hh (zero-padded)
        # wfc_ref: (Hp, Op)     W_fc^T (zero-padded)
        # bfc_ref: (1, Op)      b_fc (zero-padded)
        # out_ref: (TB, Op)
        Ip = x_ref.shape[2]
        Hp = whh_ref.shape[0]

        # Hoisted loads (issued once, not per timestep).
        whh = whh_ref[...]

        # One big MXU call: input projection + bias for ALL timesteps at once.
        # (T, TB, Ip) -> (T*TB, Ip) collapses leading dims (TB is a sublane
        # multiple, so this is a layout no-op).
        x_flat = x_ref[...].reshape(T * TB, Ip)
        xw = (jnp.dot(x_flat, wih_ref[...], preferred_element_type=jnp.float32)
              + b_ref[...])                                   # (T*TB, Hp)

        # Recurrence: hidden state carried in vregs, fully unrolled.
        h = jnp.zeros((TB, Hp), jnp.float32)
        for t in range(T):
            pre = (xw[t * TB:(t + 1) * TB, :]
                   + jnp.dot(h, whh, preferred_element_type=jnp.float32))
            h = jnp.tanh(pre)

        # Fused fc head on the register-carried h; lane-dense (TB, Op) store.
        out_ref[...] = (jnp.dot(h, wfc_ref[...], preferred_element_type=jnp.float32)
                        + bfc_ref[...]).astype(out_ref.dtype)

    return kernel


def simple_rnn_forward(x_btI, w_ih, w_hh, b_ih, b_hh, w_fc, b_fc):
    """x_btI: (B, T, I) batch-first, like the PyTorch module. Returns (B, O)."""
    B, T, I = x_btI.shape
    H = w_ih.shape[0]
    O = w_fc.shape[0]

    # Lane-pad feature dims to 128; pad batch to a sublane-multiple tile.
    Ip = _round_up(max(I, _LANE), _LANE)
    Hp = _round_up(max(H, _LANE), _LANE)
    Op = _round_up(max(O, _LANE), _LANE)
    TB = min(256, _round_up(B, _SUBLANE))       # batch tile (per grid step)
    Bp = _round_up(B, TB)

    # Glue in plain JAX: layout transforms, zero padding, bias combination.
    x_tbI = jnp.transpose(x_btI, (1, 0, 2)).astype(jnp.float32)        # (T, B, I)
    x_pad = jnp.zeros((T, Bp, Ip), jnp.float32).at[:, :B, :I].set(x_tbI)

    wih_p = jnp.zeros((Ip, Hp), jnp.float32).at[:I, :H].set(jnp.transpose(w_ih).astype(jnp.float32))
    whh_p = jnp.zeros((Hp, Hp), jnp.float32).at[:H, :H].set(jnp.transpose(w_hh).astype(jnp.float32))
    b_p = jnp.zeros((1, Hp), jnp.float32).at[0, :H].set((b_ih + b_hh).astype(jnp.float32))
    wfc_p = jnp.zeros((Hp, Op), jnp.float32).at[:H, :O].set(jnp.transpose(w_fc).astype(jnp.float32))
    bfc_p = jnp.zeros((1, Op), jnp.float32).at[0, :O].set(b_fc.astype(jnp.float32))

    kernel = _make_rnn_kernel(T, TB)

    out_p = pl.pallas_call(
        kernel,
        out_shape=jax.ShapeDtypeStruct((Bp, Op), jnp.float32),
        grid=(Bp // TB,),
        in_specs=[
            pl.BlockSpec((T, TB, Ip), lambda i: (0, i, 0)),   # x: tiled over batch
            pl.BlockSpec((Ip, Hp), lambda i: (0, 0)),         # W_ih^T (resident)
            pl.BlockSpec((Hp, Hp), lambda i: (0, 0)),         # W_hh^T (resident)
            pl.BlockSpec((1, Hp), lambda i: (0, 0)),          # combined bias
            pl.BlockSpec((Hp, Op), lambda i: (0, 0)),         # W_fc^T
            pl.BlockSpec((1, Op), lambda i: (0, 0)),          # b_fc
        ],
        out_specs=pl.BlockSpec((TB, Op), lambda i: (i, 0)),
        compiler_params=pltpu.CompilerParams(
            # Batch axis is embarrassingly parallel -> megacore sharding on v7x.
            dimension_semantics=("parallel",),
            # Safe on all generations (v7x has 64 MiB physical VMEM per TC).
            vmem_limit_bytes=32 * 1024 * 1024,
        ),
    )(x_pad, wih_p, whh_p, b_p, wfc_p, bfc_p)

    # Strip batch / lane padding.
    return out_p[:B, :O]


def _reference_forward(x_btI, w_ih, w_hh, b_ih, b_hh, w_fc, b_fc):
    """Pure-JAX reference matching torch.nn.RNN (tanh) + Linear semantics."""
    B, T, I = x_btI.shape
    H = w_ih.shape[0]
    h = jnp.zeros((B, H), jnp.float32)
    for t in range(T):
        x_t = x_btI[:, t, :]
        h = jnp.tanh(x_t @ w_ih.T + b_ih + h @ w_hh.T + b_hh)
    return h @ w_fc.T + b_fc


if __name__ == "__main__":
    B, T = 2, 8
    I, H, O = INPUT_SIZE, HIDDEN_SIZE, OUTPUT_SIZE

    key = jax.random.PRNGKey(0)
    kx, k1, k2, k3, k4, k5, k6 = jax.random.split(key, 7)

    # Deterministic parameter init (PyTorch-style U(-1/sqrt(H), 1/sqrt(H))).
    bound = 1.0 / jnp.sqrt(jnp.float32(H))
    x = jax.random.normal(kx, (B, T, I), jnp.float32)
    w_ih = jax.random.uniform(k1, (H, I), jnp.float32, -bound, bound)
    w_hh = jax.random.uniform(k2, (H, H), jnp.float32, -bound, bound)
    b_ih = jax.random.uniform(k3, (H,), jnp.float32, -bound, bound)
    b_hh = jax.random.uniform(k4, (H,), jnp.float32, -bound, bound)
    w_fc = jax.random.uniform(k5, (O, H), jnp.float32, -bound, bound)
    b_fc = jax.random.uniform(k6, (O,), jnp.float32, -bound, bound)

    out = simple_rnn_forward(x, w_ih, w_hh, b_ih, b_hh, w_fc, b_fc)
    out = jax.block_until_ready(out)

    ref = _reference_forward(x, w_ih, w_hh, b_ih, b_hh, w_fc, b_fc)
    assert out.shape == (B, O), out.shape
    assert jnp.allclose(out, ref, atol=1e-5, rtol=1e-5), (out, ref)

    print("KERNEL_OK")
</pallas_src>

<mosaic_0001>
module attributes {stable_mosaic.version = 11 : i64} {
  func.func @kernel(%arg0: i32, %arg1: memref<8x8x128xf32, #tpu.memory_space<vmem>>, %arg2: memref<128x128xf32, #tpu.memory_space<vmem>>, %arg3: memref<128x128xf32, #tpu.memory_space<vmem>>, %arg4: memref<1x128xf32, #tpu.memory_space<vmem>>, %arg5: memref<128x128xf32, #tpu.memory_space<vmem>>, %arg6: memref<1x128xf32, #tpu.memory_space<vmem>>, %arg7: memref<8x128xf32, #tpu.memory_space<vmem>>) attributes {dimension_semantics = [#tpu.dimension_semantics<parallel>], iteration_bounds = array<i64: 1>, scalar_prefetch = 0 : i64, scratch_operands = 0 : i64, tpu.core_type = #tpu.core_type<tc>, window_params = [{transform_indices = @transform_0, window_bounds = array<i64: 8, 8, 128>}, {pipeline_mode = #tpu.pipeline_mode<synchronous>, transform_indices = @transform_1, window_bounds = array<i64: 128, 128>}, {pipeline_mode = #tpu.pipeline_mode<synchronous>, transform_indices = @transform_2, window_bounds = array<i64: 128, 128>}, {pipeline_mode = #tpu.pipeline_mode<synchronous>, transform_indices = @transform_3, window_bounds = array<i64: 1, 128>}, {pipeline_mode = #tpu.pipeline_mode<synchronous>, transform_indices = @transform_4, window_bounds = array<i64: 128, 128>}, {pipeline_mode = #tpu.pipeline_mode<synchronous>, transform_indices = @transform_5, window_bounds = array<i64: 1, 128>}, {transform_indices = @transform_6, window_bounds = array<i64: 8, 128>}]} {
    %c0 = arith.constant 0 : index
    %c0_0 = arith.constant 0 : index
    %0 = vector.load %arg3[%c0, %c0_0] : memref<128x128xf32, #tpu.memory_space<vmem>>, vector<128x128xf32>
    %c0_1 = arith.constant 0 : index
    %c0_2 = arith.constant 0 : index
    %c0_3 = arith.constant 0 : index
    %1 = vector.load %arg1[%c0_1, %c0_2, %c0_3] : memref<8x8x128xf32, #tpu.memory_space<vmem>>, vector<8x8x128xf32>
    %2 = vector.shape_cast %1 : vector<8x8x128xf32> to vector<64x128xf32>
    %c0_4 = arith.constant 0 : index
    %c0_5 = arith.constant 0 : index
    %3 = vector.load %arg2[%c0_4, %c0_5] : memref<128x128xf32, #tpu.memory_space<vmem>>, vector<128x128xf32>
    %cst = arith.constant dense<0.000000e+00> : vector<64x128xf32>
    %4 = tpu.matmul %2, %3, %cst {dimension_numbers = #tpu.dot_dimension_numbers<[1], [0], [0], [1], [0, 0, 1, 1], [], []>} : vector<64x128xf32>, vector<128x128xf32>, vector<64x128xf32> -> vector<64x128xf32>
    %c0_6 = arith.constant 0 : index
    %c0_7 = arith.constant 0 : index
    %5 = vector.load %arg4[%c0_6, %c0_7] : memref<1x128xf32, #tpu.memory_space<vmem>>, vector<1x128xf32>
    %6 = vector.broadcast %5 : vector<1x128xf32> to vector<64x128xf32>
    %7 = arith.addf %4, %6 : vector<64x128xf32>
    %cst_8 = arith.constant 0.000000e+00 : f32
    %8 = vector.broadcast %cst_8 : f32 to vector<8x128xf32>
    %9 = vector.extract_strided_slice %7 {offsets = [0, 0], sizes = [8, 128], strides = [1, 1]} : vector<64x128xf32> to vector<8x128xf32>
    %cst_9 = arith.constant dense<0.000000e+00> : vector<8x128xf32>
    %10 = tpu.matmul %8, %0, %cst_9 {dimension_numbers = #tpu.dot_dimension_numbers<[1], [0], [0], [1], [0, 0, 1, 1], [], []>} : vector<8x128xf32>, vector<128x128xf32>, vector<8x128xf32> -> vector<8x128xf32>
    %11 = arith.addf %9, %10 : vector<8x128xf32>
    %12 = math.tanh %11 : vector<8x128xf32>
    %13 = vector.extract_strided_slice %7 {offsets = [8, 0], sizes = [8, 128], strides = [1, 1]} : vector<64x128xf32> to vector<8x128xf32>
    %cst_10 = arith.constant dense<0.000000e+00> : vector<8x128xf32>
    %14 = tpu.matmul %12, %0, %cst_10 {dimension_numbers = #tpu.dot_dimension_numbers<[1], [0], [0], [1], [0, 0, 1, 1], [], []>} : vector<8x128xf32>, vector<128x128xf32>, vector<8x128xf32> -> vector<8x128xf32>
    %15 = arith.addf %13, %14 : vector<8x128xf32>
    %16 = math.tanh %15 : vector<8x128xf32>
    %17 = vector.extract_strided_slice %7 {offsets = [16, 0], sizes = [8, 128], strides = [1, 1]} : vector<64x128xf32> to vector<8x128xf32>
    %cst_11 = arith.constant dense<0.000000e+00> : vector<8x128xf32>
    %18 = tpu.matmul %16, %0, %cst_11 {dimension_numbers = #tpu.dot_dimension_numbers<[1], [0], [0], [1], [0, 0, 1, 1], [], []>} : vector<8x128xf32>, vector<128x128xf32>, vector<8x128xf32> -> vector<8x128xf32>
    %19 = arith.addf %17, %18 : vector<8x128xf32>
    %20 = math.tanh %19 : vector<8x128xf32>
    %21 = vector.extract_strided_slice %7 {offsets = [24, 0], sizes = [8, 128], strides = [1, 1]} : vector<64x128xf32> to vector<8x128xf32>
    %cst_12 = arith.constant dense<0.000000e+00> : vector<8x128xf32>
    %22 = tpu.matmul %20, %0, %cst_12 {dimension_numbers = #tpu.dot_dimension_numbers<[1], [0], [0], [1], [0, 0, 1, 1], [], []>} : vector<8x128xf32>, vector<128x128xf32>, vector<8x128xf32> -> vector<8x128xf32>
    %23 = arith.addf %21, %22 : vector<8x128xf32>
    %24 = math.tanh %23 : vector<8x128xf32>
    %25 = vector.extract_strided_slice %7 {offsets = [32, 0], sizes = [8, 128], strides = [1, 1]} : vector<64x128xf32> to vector<8x128xf32>
    %cst_13 = arith.constant dense<0.000000e+00> : vector<8x128xf32>
    %26 = tpu.matmul %24, %0, %cst_13 {dimension_numbers = #tpu.dot_dimension_numbers<[1], [0], [0], [1], [0, 0, 1, 1], [], []>} : vector<8x128xf32>, vector<128x128xf32>, vector<8x128xf32> -> vector<8x128xf32>
    %27 = arith.addf %25, %26 : vector<8x128xf32>
    %28 = math.tanh %27 : vector<8x128xf32>
    %29 = vector.extract_strided_slice %7 {offsets = [40, 0], sizes = [8, 128], strides = [1, 1]} : vector<64x128xf32> to vector<8x128xf32>
    %cst_14 = arith.constant dense<0.000000e+00> : vector<8x128xf32>
    %30 = tpu.matmul %28, %0, %cst_14 {dimension_numbers = #tpu.dot_dimension_numbers<[1], [0], [0], [1], [0, 0, 1, 1], [], []>} : vector<8x128xf32>, vector<128x128xf32>, vector<8x128xf32> -> vector<8x128xf32>
    %31 = arith.addf %29, %30 : vector<8x128xf32>
    %32 = math.tanh %31 : vector<8x128xf32>
    %33 = vector.extract_strided_slice %7 {offsets = [48, 0], sizes = [8, 128], strides = [1, 1]} : vector<64x128xf32> to vector<8x128xf32>
    %cst_15 = arith.constant dense<0.000000e+00> : vector<8x128xf32>
    %34 = tpu.matmul %32, %0, %cst_15 {dimension_numbers = #tpu.dot_dimension_numbers<[1], [0], [0], [1], [0, 0, 1, 1], [], []>} : vector<8x128xf32>, vector<128x128xf32>, vector<8x128xf32> -> vector<8x128xf32>
    %35 = arith.addf %33, %34 : vector<8x128xf32>
    %36 = math.tanh %35 : vector<8x128xf32>
    %37 = vector.extract_strided_slice %7 {offsets = [56, 0], sizes = [8, 128], strides = [1, 1]} : vector<64x128xf32> to vector<8x128xf32>
    %cst_16 = arith.constant dense<0.000000e+00> : vector<8x128xf32>
    %38 = tpu.matmul %36, %0, %cst_16 {dimension_numbers = #tpu.dot_dimension_numbers<[1], [0], [0], [1], [0, 0, 1, 1], [], []>} : vector<8x128xf32>, vector<128x128xf32>, vector<8x128xf32> -> vector<8x128xf32>
    %39 = arith.addf %37, %38 : vector<8x128xf32>
    %40 = math.tanh %39 : vector<8x128xf32>
    %c0_17 = arith.constant 0 : index
    %c0_18 = arith.constant 0 : index
    %41 = vector.load %arg5[%c0_17, %c0_18] : memref<128x128xf32, #tpu.memory_space<vmem>>, vector<128x128xf32>
    %cst_19 = arith.constant dense<0.000000e+00> : vector<8x128xf32>
    %42 = tpu.matmul %40, %41, %cst_19 {dimension_numbers = #tpu.dot_dimension_numbers<[1], [0], [0], [1], [0, 0, 1, 1], [], []>} : vector<8x128xf32>, vector<128x128xf32>, vector<8x128xf32> -> vector<8x128xf32>
    %c0_20 = arith.constant 0 : index
    %c0_21 = arith.constant 0 : index
    %43 = vector.load %arg6[%c0_20, %c0_21] : memref<1x128xf32, #tpu.memory_space<vmem>>, vector<1x128xf32>
    %44 = vector.broadcast %43 : vector<1x128xf32> to vector<8x128xf32>
    %45 = arith.addf %42, %44 : vector<8x128xf32>
    %c0_22 = arith.constant 0 : index
    %c0_23 = arith.constant 0 : index
    %46 = vector.load %arg7[%c0_22, %c0_23] : memref<8x128xf32, #tpu.memory_space<vmem>>, vector<8x128xf32>
    tpu.vector_store %arg7[%c0_22, %c0_23], %45 {strides = array<i32>} : memref<8x128xf32, #tpu.memory_space<vmem>>, vector<8x128xf32>,
    return
  }
  func.func @transform_0(%arg0: i32) -> (i32, i32, i32) {
    %c0_i32 = arith.constant 0 : i32
    %c0_i32_0 = arith.constant 0 : i32
    %c0_i32_1 = arith.constant 0 : i32
    return %c0_i32, %arg0, %c0_i32_0 : i32, i32, i32
  }
  func.func @transform_1(%arg0: i32) -> (i32, i32) {
    %c0_i32 = arith.constant 0 : i32
    %c0_i32_0 = arith.constant 0 : i32
    %c0_i32_1 = arith.constant 0 : i32
    return %c0_i32, %c0_i32_0 : i32, i32
  }
  func.func @transform_2(%arg0: i32) -> (i32, i32) {
    %c0_i32 = arith.constant 0 : i32
    %c0_i32_0 = arith.constant 0 : i32
    %c0_i32_1 = arith.constant 0 : i32
    return %c0_i32, %c0_i32_0 : i32, i32
  }
  func.func @transform_3(%arg0: i32) -> (i32, i32) {
    %c0_i32 = arith.constant 0 : i32
    %c0_i32_0 = arith.constant 0 : i32
    %c0_i32_1 = arith.constant 0 : i32
    return %c0_i32, %c0_i32_0 : i32, i32
  }
  func.func @transform_4(%arg0: i32) -> (i32, i32) {
    %c0_i32 = arith.constant 0 : i32
    %c0_i32_0 = arith.constant 0 : i32
    %c0_i32_1 = arith.constant 0 : i32
    return %c0_i32, %c0_i32_0 : i32, i32
  }
  func.func @transform_5(%arg0: i32) -> (i32, i32) {
    %c0_i32 = arith.constant 0 : i32
    %c0_i32_0 = arith.constant 0 : i32
    %c0_i32_1 = arith.constant 0 : i32
    return %c0_i32, %c0_i32_0 : i32, i32
  }
  func.func @transform_6(%arg0: i32) -> (i32, i32) {
    %c0_i32 = arith.constant 0 : i32
    %c0_i32_0 = arith.constant 0 : i32
    return %arg0, %c0_i32 : i32, i32
  }
}

</mosaic_0001>

<llo_original>
// kernel: tpu_custom_call.1
$region0: #{tpu_custom_call.1}
  #allocation0 [shape = 'u32[]', space=smem, size = 0x4, offset = 0x4, fixed_abs, tag = 'smem constant byte address 0x4 - core index']
  #allocation1 [shape = 'u32[72,128]{1,0:T(1,128)}', space=vmem, size = 0x9000, scoped, tag = 'internal scratch']
  %s0 = inlined_call_operand.hbm [shape: f32[8,8,128], index: 0, kind: input, shape index: {}]
  %s1 = inlined_call_operand.hbm [shape: f32[128,128], index: 1, kind: input, shape index: {}]
  %s2 = inlined_call_operand.hbm [shape: f32[128,128], index: 2, kind: input, shape index: {}]
  %s3 = inlined_call_operand.vmem [shape: f32[1,128], index: 3, kind: input, shape index: {}]
  %s4 = inlined_call_operand.hbm [shape: f32[128,128], index: 4, kind: input, shape index: {}]
  %s5 = inlined_call_operand.vmem [shape: f32[1,128], index: 5, kind: input, shape index: {}]
  %s6 = inlined_call_operand.hbm [shape: f32[8,128], index: 6, kind: output, shape index: {}]
  %s7 = sld [smem:[#allocation0]]
  $region50: #{tpu_custom_call.1} parent=0
    _
  %s9 = ssub.s32 1, %s7
  %s10 = scalar_select 0, %s9, %s7
  $region1: #{tpu_custom_call.1} parent=0
    #allocation2 [shape = 'u8[32768]{0}', space=vmem, size = 0x8000, scoped, tag = 'input window, operand 0, single buffered']
    #allocation3 [shape = 's32[1]{0}', space=sflag, size = 0x4, scoped, tag = 'scoped memory for tpu_custom_call.1']
    #allocation4 [shape = 's32[1]{0}', space=sflag, size = 0x4, scoped, tag = 'scoped memory for tpu_custom_call.1']
    #allocation5 [shape = 'u8[65536]{0}', space=vmem, size = 0x10000, scoped, tag = 'input window, operand 1, single buffered']
    #allocation6 [shape = 's32[1]{0}', space=sflag, size = 0x4, scoped, tag = 'scoped memory for tpu_custom_call.1']
    #allocation7 [shape = 'u8[65536]{0}', space=vmem, size = 0x10000, scoped, tag = 'input window, operand 2, single buffered']
    #allocation8 [shape = 'u8[65536]{0}', space=vmem, size = 0x10000, scoped, tag = 'input window, operand 4, single buffered']
    #allocation9 [shape = 's32[1]{0}', space=sflag, size = 0x4, scoped, tag = 'scoped memory for tpu_custom_call.1']
    #allocation10 [shape = 'u8[4096]{0}', space=vmem, size = 0x1000, scoped, tag = 'output window, operand 0, single buffered']
    %11 = vsyncpa [#allocation3], 0
    %12 = vsyncpa [#allocation6], 0
    %13 = vsyncpa [#allocation9], 0
    %14 = vsyncpa [#allocation4], 0
    // Predicated region
    $region2: #{tpu_custom_call.1} parent=1 // pred_check
      _
    $region3: #{tpu_custom_call.1} parent=1 // pred_check_branch
      %16 = sbr.rel (0) target = $region5
    $region4: #{tpu_custom_call.1} parent=1 // pred_region
      %18 = vsyncadd [#allocation3], 0
      %s19 = sshll.u32 %s0, 4
      %s20 = int_to_ptr.hbm [resolvable:$true] %s19
      %s21 = sshll.u32 [#allocation2], 4
      %s22 = int_to_ptr.vmem [resolvable:$true] %s21
      %27 = dma.hbm_to_vmem [thread:$0]  %s20, 1024, %s22, [#allocation3], 128, 128, 8
    $region5: #{tpu_custom_call.1} parent=1 // pred_fallthru
      _
    // Predicated region
    $region6: #{tpu_custom_call.1} parent=1 // pred_check
      _
    $region7: #{tpu_custom_call.1} parent=1 // pred_check_branch
      %29 = sbr.rel (0) target = $region9
    $region8: #{tpu_custom_call.1} parent=1 // pred_region
      %31 = vsyncadd [#allocation6], 0
      %s32 = sshll.u32 %s1, 4
      %s33 = int_to_ptr.hbm [resolvable:$true] %s32
      %s34 = sshll.u32 [#allocation5], 4
      %s35 = int_to_ptr.vmem [resolvable:$true] %s34
      %40 = dma.hbm_to_vmem [thread:$0]  %s33, 2048, %s35, [#allocation6], 128, 128, 8
    $region9: #{tpu_custom_call.1} parent=1 // pred_fallthru
      _
    // Predicated region
    $region10: #{tpu_custom_call.1} parent=1 // pred_check
      _
    $region11: #{tpu_custom_call.1} parent=1 // pred_check_branch
      %42 = sbr.rel (0) target = $region13
    $region12: #{tpu_custom_call.1} parent=1 // pred_region
      %44 = vsyncadd [#allocation6], 0
      %s45 = sshll.u32 %s2, 4
      %s46 = int_to_ptr.hbm [resolvable:$true] %s45
      %s47 = sshll.u32 [#allocation7], 4
      %s48 = int_to_ptr.vmem [resolvable:$true] %s47
      %53 = dma.hbm_to_vmem [thread:$0]  %s46, 2048, %s48, [#allocation6], 128, 128, 8
    $region13: #{tpu_custom_call.1} parent=1 // pred_fallthru
      _
    // Predicated region
    $region14: #{tpu_custom_call.1} parent=1 // pred_check
      _
    $region15: #{tpu_custom_call.1} parent=1 // pred_check_branch
      %55 = sbr.rel (0) target = $region17
    $region16: #{tpu_custom_call.1} parent=1 // pred_region
      _
    $region17: #{tpu_custom_call.1} parent=1 // pred_fallthru
      _
    // Predicated region
    $region18: #{tpu_custom_call.1} parent=1 // pred_check
      _
    $region19: #{tpu_custom_call.1} parent=1 // pred_check_branch
      %57 = sbr.rel (0) target = $region21
    $region20: #{tpu_custom_call.1} parent=1 // pred_region
      %59 = vsyncadd [#allocation9], 0
      %s60 = sshll.u32 %s4, 4
      %s61 = int_to_ptr.hbm [resolvable:$true] %s60
      %s62 = sshll.u32 [#allocation8], 4
      %s63 = int_to_ptr.vmem [resolvable:$true] %s62
      %68 = dma.hbm_to_vmem [thread:$0]  %s61, 2048, %s63, [#allocation9], 128, 128, 8
    $region21: #{tpu_custom_call.1} parent=1 // pred_fallthru
      _
    // Predicated region
    $region22: #{tpu_custom_call.1} parent=1 // pred_check
      _
    $region23: #{tpu_custom_call.1} parent=1 // pred_check_branch
      %70 = sbr.rel (0) target = $region25
    $region24: #{tpu_custom_call.1} parent=1 // pred_region
      _
    $region25: #{tpu_custom_call.1} parent=1 // pred_fallthru
      _
    // Predicated region
    $region26: #{tpu_custom_call.1} parent=1 // pred_check
      _
    $region27: #{tpu_custom_call.1} parent=1 // pred_check_branch
      %72 = sbr.rel (0) target = $region29
    $region28: #{tpu_custom_call.1} parent=1 // pred_region
      %74 = dma.done [#allocation3], 1024
    $region29: #{tpu_custom_call.1} parent=1 // pred_fallthru
      _
    // Predicated region
    $region30: #{tpu_custom_call.1} parent=1 // pred_check
      _
    $region31: #{tpu_custom_call.1} parent=1 // pred_check_branch
      %76 = sbr.rel (0) target = $region33
    $region32: #{tpu_custom_call.1} parent=1 // pred_region
      %78 = dma.done [#allocation6], 2048
    $region33: #{tpu_custom_call.1} parent=1 // pred_fallthru
      _
    // Predicated region
    $region34: #{tpu_custom_call.1} parent=1 // pred_check
      _
    $region35: #{tpu_custom_call.1} parent=1 // pred_check_branch
      %80 = sbr.rel (0) target = $region37
    $region36: #{tpu_custom_call.1} parent=1 // pred_region
      %82 = dma.done [#allocation6], 2048
    $region37: #{tpu_custom_call.1} parent=1 // pred_fallthru
      _
    // Predicated region
    $region38: #{tpu_custom_call.1} parent=1 // pred_check
      _
    $region39: #{tpu_custom_call.1} parent=1 // pred_check_branch
      %84 = sbr.rel (0) target = $region41
    $region40: #{tpu_custom_call.1} parent=1 // pred_region
      %86 = dma.done [#allocation9], 2048
    $region41: #{tpu_custom_call.1} parent=1 // pred_fallthru
      _
    %v87 = vld [vmem:[#allocation7] sm:$0xff]
    %v88 = vld [vmem:[#allocation7 + $0x8] sm:$0xff]
    %v89 = vld [vmem:[#allocation7 + $0x10] sm:$0xff]
    %v90 = vld [vmem:[#allocation7 + $0x18] sm:$0xff]
    %v91 = vld [vmem:[#allocation7 + $0x20] sm:$0xff]
    %v92 = vld [vmem:[#allocation7 + $0x28] sm:$0xff]
    %v93 = vld [vmem:[#allocation7 + $0x30] sm:$0xff]
    %v94 = vld [vmem:[#allocation7 + $0x38] sm:$0xff]
    %v95 = vld [vmem:[#allocation7 + $0x40] sm:$0xff]
    %v96 = vld [vmem:[#allocation7 + $0x48] sm:$0xff]
    %v97 = vld [vmem:[#allocation7 + $0x50] sm:$0xff]
    %v98 = vld [vmem:[#allocation7 + $0x58] sm:$0xff]
    %v99 = vld [vmem:[#allocation7 + $0x60] sm:$0xff]
    %v100 = vld [vmem:[#allocation7 + $0x68] sm:$0xff]
    %v101 = vld [vmem:[#allocation7 + $0x70] sm:$0xff]
    %v102 = vld [vmem:[#allocation7 + $0x78] sm:$0xff]
    %v103 = vld [vmem:[#allocation2] sm:$0xff]
    %v104 = vld [vmem:[#allocation2 + $0x8] sm:$0xff]
    %v105 = vld [vmem:[#allocation2 + $0x10] sm:$0xff]
    %v106 = vld [vmem:[#allocation2 + $0x18] sm:$0xff]
    %v107 = vld [vmem:[#allocation2 + $0x20] sm:$0xff]
    %v108 = vld [vmem:[#allocation2 + $0x28] sm:$0xff]
    %v109 = vld [vmem:[#allocation2 + $0x30] sm:$0xff]
    %v110 = vld [vmem:[#allocation2 + $0x38] sm:$0xff]
    %v111 = vld [vmem:[#allocation5] sm:$0xff]
    %v112 = vld [vmem:[#allocation5 + $0x8] sm:$0xff]
    %v113 = vld [vmem:[#allocation5 + $0x10] sm:$0xff]
    %v114 = vld [vmem:[#allocation5 + $0x18] sm:$0xff]
    %v115 = vld [vmem:[#allocation5 + $0x20] sm:$0xff]
    %v116 = vld [vmem:[#allocation5 + $0x28] sm:$0xff]
    %v117 = vld [vmem:[#allocation5 + $0x30] sm:$0xff]
    %v118 = vld [vmem:[#allocation5 + $0x38] sm:$0xff]
    %v119 = vld [vmem:[#allocation5 + $0x40] sm:$0xff]
    %v120 = vld [vmem:[#allocation5 + $0x48] sm:$0xff]
    %v121 = vld [vmem:[#allocation5 + $0x50] sm:$0xff]
    %v122 = vld [vmem:[#allocation5 + $0x58] sm:$0xff]
    %v123 = vld [vmem:[#allocation5 + $0x60] sm:$0xff]
    %v124 = vld [vmem:[#allocation5 + $0x68] sm:$0xff]
    %v125 = vld [vmem:[#allocation5 + $0x70] sm:$0xff]
    %v126 = vld [vmem:[#allocation5 + $0x78] sm:$0xff]
    %v127 = vld [vmem:[%s3] sm:$0x1]
    %v129 = vperm.slane %v127, 0
    %131 = vmatpush.msra.mxu0 %v126
    %132 = vmatpush.msra.mxu0 %v125
    %133 = vmatpush.msra.mxu0 %v124
    %134 = vmatpush.msra.mxu0 %v123
    %135 = vmatpush.msra.mxu0 %v122
    %136 = vmatpush.msra.mxu0 %v121
    %137 = vmatpush.msra.mxu0 %v120
    %138 = vmatpush.msra.mxu0 %v119
    %139 = vmatpush.msra.mxu0 %v118
    %140 = vmatpush.msra.mxu0 %v117
    %141 = vmatpush.msra.mxu0 %v116
    %142 = vmatpush.msra.mxu0 %v115
    %143 = vmatpush.msra.mxu0 %v114
    %144 = vmatpush.msra.mxu0 %v113
    %145 = vmatpush.msra.mxu0 %v112
    %146 = vmatpush.msra.mxu0 %v111
    %147 = vmatmul.f32.gmra.mxu0 %v103
    %v148 = vpop.f32.mrf.mxu0
    %v149 = vadd.f32 %v129, %v148
    %150 = vmatmul.f32.gmra.mxu0 %v104
    %v151 = vpop.f32.mrf.mxu0
    %v152 = vadd.f32 %v129, %v151
    %153 = vmatmul.f32.gmra.mxu0 %v105
    %v154 = vpop.f32.mrf.mxu0
    %v155 = vadd.f32 %v129, %v154
    %156 = vmatmul.f32.gmra.mxu0 %v106
    %v157 = vpop.f32.mrf.mxu0
    %v158 = vadd.f32 %v129, %v157
    %159 = vmatmul.f32.gmra.mxu0 %v107
    %v160 = vpop.f32.mrf.mxu0
    %v161 = vadd.f32 %v129, %v160
    %162 = vmatmul.f32.gmra.mxu0 %v108
    %v163 = vpop.f32.mrf.mxu0
    %v164 = vadd.f32 %v129, %v163
    %165 = vmatmul.f32.gmra.mxu0 %v109
    %v166 = vpop.f32.mrf.mxu0
    %v167 = vadd.f32 %v129, %v166
    %168 = vmatmul.f32.gmra.mxu0 %v110
    %v169 = vpop.f32.mrf.mxu0
    %v170 = vadd.f32 %v129, %v169
    %171 = vdwg.mxu0
    %172 = vmatpush.msra.mxu0 %v102
    %173 = vmatpush.msra.mxu0 %v101
    %174 = vmatpush.msra.mxu0 %v100
    %175 = vmatpush.msra.mxu0 %v99
    %176 = vmatpush.msra.mxu0 %v98
    %177 = vmatpush.msra.mxu0 %v97
    %178 = vmatpush.msra.mxu0 %v96
    %179 = vmatpush.msra.mxu0 %v95
    %180 = vmatpush.msra.mxu0 %v94
    %181 = vmatpush.msra.mxu0 %v93
    %182 = vmatpush.msra.mxu0 %v92
    %183 = vmatpush.msra.mxu0 %v91
    %184 = vmatpush.msra.mxu0 %v90
    %185 = vmatpush.msra.mxu0 %v89
    %186 = vmatpush.msra.mxu0 %v88
    %187 = vmatpush.msra.mxu0 %v87
    %188 = vmatmul.f32.gmra.mxu0 0.0
    %v189 = vpop.f32.mrf.mxu0
    %v190 = vadd.f32 0.0, %v189
    %191 = vdwg.mxu0
    %v192 = vadd.f32 %v149, %v190
    %v193 = vtanh.pop %v192
    %194 = vmatpush.msra.mxu0 %v102
    %195 = vmatpush.msra.mxu0 %v101
    %196 = vmatpush.msra.mxu0 %v100
    %197 = vmatpush.msra.mxu0 %v99
    %198 = vmatpush.msra.mxu0 %v98
    %199 = vmatpush.msra.mxu0 %v97
    %200 = vmatpush.msra.mxu0 %v96
    %201 = vmatpush.msra.mxu0 %v95
    %202 = vmatpush.msra.mxu0 %v94
    %203 = vmatpush.msra.mxu0 %v93
    %204 = vmatpush.msra.mxu0 %v92
    %205 = vmatpush.msra.mxu0 %v91
    %206 = vmatpush.msra.mxu0 %v90
    %207 = vmatpush.msra.mxu0 %v89
    %208 = vmatpush.msra.mxu0 %v88
    %209 = vmatpush.msra.mxu0 %v87
    %210 = vmatmul.f32.gmra.mxu0 %v193
    %v211 = vpop.f32.mrf.mxu0
    %v212 = vadd.f32 0.0, %v211
    %213 = vdwg.mxu0
    %v214 = vadd.f32 %v152, %v212
    %v215 = vtanh.pop %v214
    %216 = vmatpush.msra.mxu0 %v102
    %217 = vmatpush.msra.mxu0 %v101
    %218 = vmatpush.msra.mxu0 %v100
    %219 = vmatpush.msra.mxu0 %v99
    %220 = vmatpush.msra.mxu0 %v98
    %221 = vmatpush.msra.mxu0 %v97
    %222 = vmatpush.msra.mxu0 %v96
    %223 = vmatpush.msra.mxu0 %v95
    %224 = vmatpush.msra.mxu0 %v94
    %225 = vmatpush.msra.mxu0 %v93
    %226 = vmatpush.msra.mxu0 %v92
    %227 = vmatpush.msra.mxu0 %v91
    %228 = vmatpush.msra.mxu0 %v90
    %229 = vmatpush.msra.mxu0 %v89
    %230 = vmatpush.msra.mxu0 %v88
    %231 = vmatpush.msra.mxu0 %v87
    %232 = vmatmul.f32.gmra.mxu0 %v215
    %v233 = vpop.f32.mrf.mxu0
    %v234 = vadd.f32 0.0, %v233
    %235 = vdwg.mxu0
    %v236 = vadd.f32 %v155, %v234
    %v237 = vtanh.pop %v236
    %238 = vmatpush.msra.mxu0 %v102
    %239 = vmatpush.msra.mxu0 %v101
    %240 = vmatpush.msra.mxu0 %v100
    %241 = vmatpush.msra.mxu0 %v99
    %242 = vmatpush.msra.mxu0 %v98
    %243 = vmatpush.msra.mxu0 %v97
    %244 = vmatpush.msra.mxu0 %v96
    %245 = vmatpush.msra.mxu0 %v95
    %246 = vmatpush.msra.mxu0 %v94
    %247 = vmatpush.msra.mxu0 %v93
    %248 = vmatpush.msra.mxu0 %v92
    %249 = vmatpush.msra.mxu0 %v91
    %250 = vmatpush.msra.mxu0 %v90
    %251 = vmatpush.msra.mxu0 %v89
    %252 = vmatpush.msra.mxu0 %v88
    %253 = vmatpush.msra.mxu0 %v87
    %254 = vmatmul.f32.gmra.mxu0 %v237
    %v255 = vpop.f32.mrf.mxu0
    %v256 = vadd.f32 0.0, %v255
    %257 = vdwg.mxu0
    %v258 = vadd.f32 %v158, %v256
    %v259 = vtanh.pop %v258
    %260 = vmatpush.msra.mxu0 %v102
    %261 = vmatpush.msra.mxu0 %v101
    %262 = vmatpush.msra.mxu0 %v100
    %263 = vmatpush.msra.mxu0 %v99
    %264 = vmatpush.msra.mxu0 %v98
    %265 = vmatpush.msra.mxu0 %v97
    %266 = vmatpush.msra.mxu0 %v96
    %267 = vmatpush.msra.mxu0 %v95
    %268 = vmatpush.msra.mxu0 %v94
    %269 = vmatpush.msra.mxu0 %v93
    %270 = vmatpush.msra.mxu0 %v92
    %271 = vmatpush.msra.mxu0 %v91
    %272 = vmatpush.msra.mxu0 %v90
    %273 = vmatpush.msra.mxu0 %v89
    %274 = vmatpush.msra.mxu0 %v88
    %275 = vmatpush.msra.mxu0 %v87
    %276 = vmatmul.f32.gmra.mxu0 %v259
    %v277 = vpop.f32.mrf.mxu0
    %v278 = vadd.f32 0.0, %v277
    %279 = vdwg.mxu0
    %v280 = vadd.f32 %v161, %v278
    %v281 = vtanh.pop %v280
    %282 = vmatpush.msra.mxu0 %v102
    %283 = vmatpush.msra.mxu0 %v101
    %284 = vmatpush.msra.mxu0 %v100
    %285 = vmatpush.msra.mxu0 %v99
    %286 = vmatpush.msra.mxu0 %v98
    %287 = vmatpush.msra.mxu0 %v97
    %288 = vmatpush.msra.mxu0 %v96
    %289 = vmatpush.msra.mxu0 %v95
    %290 = vmatpush.msra.mxu0 %v94
    %291 = vmatpush.msra.mxu0 %v93
    %292 = vmatpush.msra.mxu0 %v92
    %293 = vmatpush.msra.mxu0 %v91
    %294 = vmatpush.msra.mxu0 %v90
    %295 = vmatpush.msra.mxu0 %v89
    %296 = vmatpush.msra.mxu0 %v88
    %297 = vmatpush.msra.mxu0 %v87
    %298 = vmatmul.f32.gmra.mxu0 %v281
    %v299 = vpop.f32.mrf.mxu0
    %v300 = vadd.f32 0.0, %v299
    %301 = vdwg.mxu0
    %v302 = vadd.f32 %v164, %v300
    %v303 = vtanh.pop %v302
    %304 = vmatpush.msra.mxu0 %v102
    %305 = vmatpush.msra.mxu0 %v101
    %306 = vmatpush.msra.mxu0 %v100
    %307 = vmatpush.msra.mxu0 %v99
    %308 = vmatpush.msra.mxu0 %v98
    %309 = vmatpush.msra.mxu0 %v97
    %310 = vmatpush.msra.mxu0 %v96
    %311 = vmatpush.msra.mxu0 %v95
    %312 = vmatpush.msra.mxu0 %v94
    %313 = vmatpush.msra.mxu0 %v93
    %314 = vmatpush.msra.mxu0 %v92
    %315 = vmatpush.msra.mxu0 %v91
    %316 = vmatpush.msra.mxu0 %v90
    %317 = vmatpush.msra.mxu0 %v89
    %318 = vmatpush.msra.mxu0 %v88
    %319 = vmatpush.msra.mxu0 %v87
    %320 = vmatmul.f32.gmra.mxu0 %v303
    %v321 = vpop.f32.mrf.mxu0
    %v322 = vadd.f32 0.0, %v321
    %323 = vdwg.mxu0
    %v324 = vadd.f32 %v167, %v322
    %v325 = vtanh.pop %v324
    %326 = vmatpush.msra.mxu0 %v102
    %327 = vmatpush.msra.mxu0 %v101
    %328 = vmatpush.msra.mxu0 %v100
    %329 = vmatpush.msra.mxu0 %v99
    %330 = vmatpush.msra.mxu0 %v98
    %331 = vmatpush.msra.mxu0 %v97
    %332 = vmatpush.msra.mxu0 %v96
    %333 = vmatpush.msra.mxu0 %v95
    %334 = vmatpush.msra.mxu0 %v94
    %335 = vmatpush.msra.mxu0 %v93
    %336 = vmatpush.msra.mxu0 %v92
    %337 = vmatpush.msra.mxu0 %v91
    %338 = vmatpush.msra.mxu0 %v90
    %339 = vmatpush.msra.mxu0 %v89
    %340 = vmatpush.msra.mxu0 %v88
    %341 = vmatpush.msra.mxu0 %v87
    %342 = vmatmul.f32.gmra.mxu0 %v325
    %v343 = vpop.f32.mrf.mxu0
    %v344 = vadd.f32 0.0, %v343
    %345 = vdwg.mxu0
    %v346 = vadd.f32 %v170, %v344
    %v347 = vtanh.pop %v346
    %v348 = vld [vmem:[#allocation8] sm:$0xff]
    %v349 = vld [vmem:[#allocation8 + $0x8] sm:$0xff]
    %v350 = vld [vmem:[#allocation8 + $0x10] sm:$0xff]
    %v351 = vld [vmem:[#allocation8 + $0x18] sm:$0xff]
    %v352 = vld [vmem:[#allocation8 + $0x20] sm:$0xff]
    %v353 = vld [vmem:[#allocation8 + $0x28] sm:$0xff]
    %v354 = vld [vmem:[#allocation8 + $0x30] sm:$0xff]
    %v355 = vld [vmem:[#allocation8 + $0x38] sm:$0xff]
    %v356 = vld [vmem:[#allocation8 + $0x40] sm:$0xff]
    %v357 = vld [vmem:[#allocation8 + $0x48] sm:$0xff]
    %v358 = vld [vmem:[#allocation8 + $0x50] sm:$0xff]
    %v359 = vld [vmem:[#allocation8 + $0x58] sm:$0xff]
    %v360 = vld [vmem:[#allocation8 + $0x60] sm:$0xff]
    %v361 = vld [vmem:[#allocation8 + $0x68] sm:$0xff]
    %v362 = vld [vmem:[#allocation8 + $0x70] sm:$0xff]
    %v363 = vld [vmem:[#allocation8 + $0x78] sm:$0xff]
    %v364 = vld [vmem:[%s5] sm:$0x1]
    %v366 = vperm.slane %v364, 0
    %368 = vmatpush.msra.mxu0 %v363
    %369 = vmatpush.msra.mxu0 %v362
    %370 = vmatpush.msra.mxu0 %v361
    %371 = vmatpush.msra.mxu0 %v360
    %372 = vmatpush.msra.mxu0 %v359
    %373 = vmatpush.msra.mxu0 %v358
    %374 = vmatpush.msra.mxu0 %v357
    %375 = vmatpush.msra.mxu0 %v356
    %376 = vmatpush.msra.mxu0 %v355
    %377 = vmatpush.msra.mxu0 %v354
    %378 = vmatpush.msra.mxu0 %v353
    %379 = vmatpush.msra.mxu0 %v352
    %380 = vmatpush.msra.mxu0 %v351
    %381 = vmatpush.msra.mxu0 %v350
    %382 = vmatpush.msra.mxu0 %v349
    %383 = vmatpush.msra.mxu0 %v348
    %384 = vmatmul.f32.gmra.mxu0 %v347
    %v385 = vpop.f32.mrf.mxu0
    %v386 = vadd.f32 %v366, %v385
    %387 = vdwg.mxu0
    %388 = vst [vmem:[#allocation10] sm:$0xff] %v386
    // Predicated region
    $region42: #{tpu_custom_call.1} parent=1 // pred_check
      _
    $region43: #{tpu_custom_call.1} parent=1 // pred_check_branch
      %390 = sbr.rel (0) target = $region45
    $region44: #{tpu_custom_call.1} parent=1 // pred_region
      %392 = vsyncadd [#allocation4], 0
      %s394 = sshll.u32 [#allocation10], 4
      %s395 = int_to_ptr.vmem [resolvable:$true] %s394
      %s396 = sshll.u32 %s6, 4
      %s397 = int_to_ptr.hbm [resolvable:$true] %s396
      %399 = dma.vmem_to_hbm [thread:$0]  %s395, 128, %s397, [#allocation4]
    $region45: #{tpu_custom_call.1} parent=1 // pred_fallthru
      _
    // Predicated region
    $region46: #{tpu_custom_call.1} parent=1 // pred_check
      _
    $region47: #{tpu_custom_call.1} parent=1 // pred_check_branch
      %401 = sbr.rel (0) target = $region49
    $region48: #{tpu_custom_call.1} parent=1 // pred_region
      %403 = dma.done [#allocation4], 128
    $region49: #{tpu_custom_call.1} parent=1 // pred_fallthru
      _
    %404 = vsyncpa [#allocation3], 1
    %405 = vsyncpa [#allocation6], 1
    %406 = vsyncpa [#allocation9], 1
    %407 = vsyncpa [#allocation4], 1

</llo_original>
